<compile_context>
chip_gen: v5e
topology: v5e:2x2
jax: 0.10.0
libtpu: 0.0.40
codegen_flags: <defaults>
</compile_context>

<pallas_src>
from functools import partial

import jax
import jax.numpy as jnp
from jax.experimental import pallas as pl
from jax.experimental.pallas import tpu as pltpu

# Architecture (mirrors the PyTorch OrderedDict)
LINEAR_DIMS = [(128, 128), (128, 64), (64, 64), (64, 64),
               (64, 32), (32, 32), (32, 16), (16, 16)]
BN_DIMS = [128, 128, 64, 64, 64, 32, 32, 16, 16]
BN_EPS = 1e-5

N_LAYERS = len(LINEAR_DIMS)   # 8
D = 128                       # lane-dense working width
OUT_DIM = 16                  # true output width (lanes 0..15)

TB_MAX = 2048                 # max batch-tile rows per grid step
ROW_ALIGN = 8                 # sublane granularity
MIN_GRID_STEPS = 2            # so v7x megacore gets both TensorCores busy

# MXU operand dtype.  Weights are stored in this dtype; accumulation is f32.
MATMUL_DTYPE = jnp.bfloat16


def _round_up(a, b):
    return (a + b - 1) // b * b


# ---------------------------------------------------------------------------
# Kernel
# ---------------------------------------------------------------------------
def embedding_kernel(x_ref, w_ref, v_ref, o_ref):
    """x_ref: (TB, 128) f32   input rows (lane-dense)
       w_ref: (8, 128, 128) bf16  BN-folded, zero-padded weights, (in, out)
       v_ref: (16, 128) f32  row0=bn0 scale, row1=bn0 shift, rows 2..9 = biases
       o_ref: (TB, 128) f32  lane-dense output (first 16 lanes meaningful)"""
    s0 = v_ref[0:1, :]                       # (1, 128) bn0 scale
    t0 = v_ref[1:2, :]                       # (1, 128) bn0 shift

    # bn0 + relu0 (VPU, f32; padded lanes carry scale=shift=0 so zeros persist)
    h = jnp.maximum(x_ref[...] * s0 + t0, 0.0)

    # fc_k (with bn_{k+1} folded in) then ReLU, except no ReLU after the last.
    # Weights are already bf16 in VMEM -> only the activation operand is cast.
    for l in range(N_LAYERS):
        b = v_ref[2 + l: 3 + l, :]           # (1, 128) folded bias, f32
        h = jnp.dot(h.astype(MATMUL_DTYPE), w_ref[l],
                    preferred_element_type=jnp.float32) + b
        if l < N_LAYERS - 1:
            h = jnp.maximum(h, 0.0)

    o_ref[...] = h.astype(o_ref.dtype)


# ---------------------------------------------------------------------------
# Parameter construction / packing
# ---------------------------------------------------------------------------
def make_raw_params(key):
    """Deterministic per-layer parameters in the original (unfused) form."""
    keys = jax.random.split(key, 64)
    ki = 0
    bn_scale, bn_shift = [], []
    lin_w, lin_b = [], []
    for li in range(len(BN_DIMS)):
        c = BN_DIMS[li]
        gamma = 1.0 + 0.1 * jax.random.normal(keys[ki], (c,), jnp.float32); ki += 1
        beta = 0.1 * jax.random.normal(keys[ki], (c,), jnp.float32); ki += 1
        rmean = 0.1 * jax.random.normal(keys[ki], (c,), jnp.float32); ki += 1
        rvar = 1.0 + 0.1 * jax.random.uniform(keys[ki], (c,), jnp.float32); ki += 1
        s = gamma / jnp.sqrt(rvar + BN_EPS)
        bn_scale.append(s)
        bn_shift.append(beta - rmean * s)
        if li < N_LAYERS:
            cin, cout = LINEAR_DIMS[li]
            # nn.Linear weight is (out, in); keep (in, out) for x @ W.
            w = (jax.random.normal(keys[ki], (cin, cout), jnp.float32)
                 / jnp.sqrt(jnp.float32(cin))); ki += 1
            b = 0.1 * jax.random.normal(keys[ki], (cout,), jnp.float32); ki += 1
            lin_w.append(w)
            lin_b.append(b)
    return bn_scale, bn_shift, lin_w, lin_b


def pack_params(raw):
    """Fold bn1..bn8 into fc0..fc7 (exact, f32) and pack into two lane-dense
    slabs.  Weights are emitted in bf16 so the kernel never casts them."""
    bn_scale, bn_shift, lin_w, lin_b = raw

    w_stack = jnp.zeros((N_LAYERS, D, D), jnp.float32)
    vec_pack = jnp.zeros((16, D), jnp.float32)

    # bn0 affine (applied in-kernel before fc0)
    vec_pack = vec_pack.at[0, :BN_DIMS[0]].set(bn_scale[0])
    vec_pack = vec_pack.at[1, :BN_DIMS[0]].set(bn_shift[0])

    for k in range(N_LAYERS):
        cin, cout = LINEAR_DIMS[k]
        s_next = bn_scale[k + 1]             # (cout,)
        t_next = bn_shift[k + 1]             # (cout,)
        w_fold = lin_w[k] * s_next[None, :]  # (cin, cout), f32 fold
        b_fold = lin_b[k] * s_next + t_next  # (cout,)
        w_stack = w_stack.at[k, :cin, :cout].set(w_fold)
        vec_pack = vec_pack.at[2 + k, :cout].set(b_fold)

    return w_stack.astype(MATMUL_DTYPE), vec_pack


# ---------------------------------------------------------------------------
# Wrapper
# ---------------------------------------------------------------------------
@partial(jax.jit, static_argnames=("tb",))
def _embedding_net_call(x_pad, w_stack, vec_pack, *, tb):
    n_pad = x_pad.shape[0]
    grid = (n_pad // tb,)
    return pl.pallas_call(
        embedding_kernel,
        out_shape=jax.ShapeDtypeStruct((n_pad, D), jnp.float32),
        grid_spec=pltpu.PrefetchScalarGridSpec(
            num_scalar_prefetch=0,
            grid=grid,
            in_specs=[
                pl.BlockSpec((tb, D), lambda i: (i, 0)),
                # constant block index -> kept resident across the grid
                pl.BlockSpec((N_LAYERS, D, D), lambda i: (0, 0, 0)),
                pl.BlockSpec((16, D), lambda i: (0, 0)),
            ],
            out_specs=pl.BlockSpec((tb, D), lambda i: (i, 0)),
        ),
        compiler_params=pltpu.CompilerParams(
            dimension_semantics=("parallel",),
            vmem_limit_bytes=32 * 1024 * 1024,
        ),
    )(x_pad, w_stack, vec_pack)


def _choose_tiling(n):
    """Balanced batch tiling: pad at most a handful of rows, and keep >= 2
    grid steps when possible so v7x can shard the parallel axis over 2 TCs."""
    if n >= 2 * ROW_ALIGN:
        steps = max(pl.cdiv(n, TB_MAX), MIN_GRID_STEPS)
    else:
        steps = 1
    tb = _round_up(pl.cdiv(n, steps), ROW_ALIGN)
    tb = min(tb, TB_MAX)
    n_pad = _round_up(n, tb)
    return tb, n_pad


def embedding_net_padded(x, w_stack, vec_pack):
    """Returns the raw lane-dense (n_pad, 128) f32 slab.  Rows >= n and lanes
    >= 16 are padding garbage; consumers that can index into the slab directly
    avoid the extra HBM round-trip of a wrapper-side slice."""
    n = x.shape[0]
    tb, n_pad = _choose_tiling(n)
    if n_pad != n:
        x = jnp.pad(x, ((0, n_pad - n), (0, 0)))
    return _embedding_net_call(x, w_stack, vec_pack, tb=tb), n


def embedding_net(x, w_stack, vec_pack):
    out, n = embedding_net_padded(x, w_stack, vec_pack)
    return out[:n, :OUT_DIM]


# ---------------------------------------------------------------------------
# Pure-JAX references
# ---------------------------------------------------------------------------
def reference_f32(x, raw):
    """Original, unfused layer order in full f32."""
    bn_scale, bn_shift, lin_w, lin_b = raw
    h = x.astype(jnp.float32)
    for k in range(N_LAYERS):
        h = jnp.maximum(h * bn_scale[k] + bn_shift[k], 0.0)
        h = h @ lin_w[k] + lin_b[k]
    h = h * bn_scale[N_LAYERS] + bn_shift[N_LAYERS]
    return h


def reference_folded_bf16(x, w_stack, vec_pack):
    """Mirrors the kernel math exactly (bf16 operands, f32 accumulation)."""
    h = jnp.maximum(x.astype(jnp.float32) * vec_pack[0] + vec_pack[1], 0.0)
    for l in range(N_LAYERS):
        h = jnp.dot(h.astype(MATMUL_DTYPE), w_stack[l],
                    preferred_element_type=jnp.float32) + vec_pack[2 + l]
        if l < N_LAYERS - 1:
            h = jnp.maximum(h, 0.0)
    return h[:, :OUT_DIM]


if __name__ == "__main__":
    key = jax.random.PRNGKey(0)
    kx, kp = jax.random.split(key)

    N = 16
    x = jax.random.normal(kx, (N, 128), jnp.float32)

    raw = make_raw_params(kp)
    w_stack, vec_pack = pack_params(raw)

    out = embedding_net(x, w_stack, vec_pack)
    out = jax.block_until_ready(out)
    assert out.shape == (N, OUT_DIM), out.shape

    # Exactness check against a pure-JAX mirror of the kernel (bf16 operands).
    ref_bf16 = reference_folded_bf16(x, w_stack, vec_pack)
    assert jnp.allclose(out, ref_bf16, atol=2e-3, rtol=2e-3), \
        float(jnp.max(jnp.abs(out - ref_bf16)))

    # Sanity check against the original full-f32 unfused computation
    # (loosened tolerance because MXU operands are bf16).
    ref_f32 = reference_f32(x, raw)
    assert jnp.allclose(out, ref_f32, atol=1e-1, rtol=1e-1), \
        float(jnp.max(jnp.abs(out - ref_f32)))

    print("KERNEL_OK")
</pallas_src>

<mosaic_0001>
module attributes {stable_mosaic.version = 11 : i64} {
  func.func @embedding_kernel(%arg0: i32, %arg1: memref<8x128xf32, #tpu.memory_space<vmem>>, %arg2: memref<8x128x128xbf16, #tpu.memory_space<vmem>>, %arg3: memref<16x128xf32, #tpu.memory_space<vmem>>, %arg4: memref<8x128xf32, #tpu.memory_space<vmem>>) attributes {dimension_semantics = [#tpu.dimension_semantics<parallel>], iteration_bounds = array<i64: 2>, scalar_prefetch = 0 : i64, scratch_operands = 0 : i64, tpu.core_type = #tpu.core_type<tc>, window_params = [{transform_indices = @transform_0, window_bounds = array<i64: 8, 128>}, {pipeline_mode = #tpu.pipeline_mode<synchronous>, transform_indices = @transform_1, window_bounds = array<i64: 8, 128, 128>}, {pipeline_mode = #tpu.pipeline_mode<synchronous>, transform_indices = @transform_2, window_bounds = array<i64: 16, 128>}, {transform_indices = @transform_3, window_bounds = array<i64: 8, 128>}]} {
    %c0 = arith.constant 0 : index
    %c0_0 = arith.constant 0 : index
    %0 = vector.load %arg3[%c0, %c0_0] : memref<16x128xf32, #tpu.memory_space<vmem>>, vector<1x128xf32>
    %c1 = arith.constant 1 : index
    %c0_1 = arith.constant 0 : index
    %1 = vector.load %arg3[%c1, %c0_1] : memref<16x128xf32, #tpu.memory_space<vmem>>, vector<1x128xf32>
    %c0_2 = arith.constant 0 : index
    %c0_3 = arith.constant 0 : index
    %2 = vector.load %arg1[%c0_2, %c0_3] : memref<8x128xf32, #tpu.memory_space<vmem>>, vector<8x128xf32>
    %3 = vector.broadcast %0 : vector<1x128xf32> to vector<8x128xf32>
    %4 = arith.mulf %2, %3 : vector<8x128xf32>
    %5 = vector.broadcast %1 : vector<1x128xf32> to vector<8x128xf32>
    %6 = arith.addf %4, %5 : vector<8x128xf32>
    %cst = arith.constant 0.000000e+00 : f32
    %7 = vector.broadcast %cst : f32 to vector<8x128xf32>
    %8 = arith.maximumf %6, %7 : vector<8x128xf32>
    %c2 = arith.constant 2 : index
    %c0_4 = arith.constant 0 : index
    %9 = vector.load %arg3[%c2, %c0_4] : memref<16x128xf32, #tpu.memory_space<vmem>>, vector<1x128xf32>
    %10 = arith.truncf %8 : vector<8x128xf32> to vector<8x128xbf16>
    %c0_5 = arith.constant 0 : index
    %c0_6 = arith.constant 0 : index
    %c0_7 = arith.constant 0 : index
    %11 = vector.load %arg2[%c0_5, %c0_6, %c0_7] : memref<8x128x128xbf16, #tpu.memory_space<vmem>>, vector<1x128x128xbf16>
    %12 = vector.shape_cast %11 : vector<1x128x128xbf16> to vector<128x128xbf16>
    %cst_8 = arith.constant dense<0.000000e+00> : vector<8x128xf32>
    %13 = tpu.matmul %10, %12, %cst_8 {dimension_numbers = #tpu.dot_dimension_numbers<[1], [0], [0], [1], [0, 0, 1, 1], [], []>} : vector<8x128xbf16>, vector<128x128xbf16>, vector<8x128xf32> -> vector<8x128xf32>
    %14 = vector.broadcast %9 : vector<1x128xf32> to vector<8x128xf32>
    %15 = arith.addf %13, %14 : vector<8x128xf32>
    %cst_9 = arith.constant 0.000000e+00 : f32
    %16 = vector.broadcast %cst_9 : f32 to vector<8x128xf32>
    %17 = arith.maximumf %15, %16 : vector<8x128xf32>
    %c3 = arith.constant 3 : index
    %c0_10 = arith.constant 0 : index
    %18 = vector.load %arg3[%c3, %c0_10] : memref<16x128xf32, #tpu.memory_space<vmem>>, vector<1x128xf32>
    %19 = arith.truncf %17 : vector<8x128xf32> to vector<8x128xbf16>
    %c1_11 = arith.constant 1 : index
    %c0_12 = arith.constant 0 : index
    %c0_13 = arith.constant 0 : index
    %20 = vector.load %arg2[%c1_11, %c0_12, %c0_13] : memref<8x128x128xbf16, #tpu.memory_space<vmem>>, vector<1x128x128xbf16>
    %21 = vector.shape_cast %20 : vector<1x128x128xbf16> to vector<128x128xbf16>
    %cst_14 = arith.constant dense<0.000000e+00> : vector<8x128xf32>
    %22 = tpu.matmul %19, %21, %cst_14 {dimension_numbers = #tpu.dot_dimension_numbers<[1], [0], [0], [1], [0, 0, 1, 1], [], []>} : vector<8x128xbf16>, vector<128x128xbf16>, vector<8x128xf32> -> vector<8x128xf32>
    %23 = vector.broadcast %18 : vector<1x128xf32> to vector<8x128xf32>
    %24 = arith.addf %22, %23 : vector<8x128xf32>
    %cst_15 = arith.constant 0.000000e+00 : f32
    %25 = vector.broadcast %cst_15 : f32 to vector<8x128xf32>
    %26 = arith.maximumf %24, %25 : vector<8x128xf32>
    %c4 = arith.constant 4 : index
    %c0_16 = arith.constant 0 : index
    %27 = vector.load %arg3[%c4, %c0_16] : memref<16x128xf32, #tpu.memory_space<vmem>>, vector<1x128xf32>
    %28 = arith.truncf %26 : vector<8x128xf32> to vector<8x128xbf16>
    %c2_17 = arith.constant 2 : index
    %c0_18 = arith.constant 0 : index
    %c0_19 = arith.constant 0 : index
    %29 = vector.load %arg2[%c2_17, %c0_18, %c0_19] : memref<8x128x128xbf16, #tpu.memory_space<vmem>>, vector<1x128x128xbf16>
    %30 = vector.shape_cast %29 : vector<1x128x128xbf16> to vector<128x128xbf16>
    %cst_20 = arith.constant dense<0.000000e+00> : vector<8x128xf32>
    %31 = tpu.matmul %28, %30, %cst_20 {dimension_numbers = #tpu.dot_dimension_numbers<[1], [0], [0], [1], [0, 0, 1, 1], [], []>} : vector<8x128xbf16>, vector<128x128xbf16>, vector<8x128xf32> -> vector<8x128xf32>
    %32 = vector.broadcast %27 : vector<1x128xf32> to vector<8x128xf32>
    %33 = arith.addf %31, %32 : vector<8x128xf32>
    %cst_21 = arith.constant 0.000000e+00 : f32
    %34 = vector.broadcast %cst_21 : f32 to vector<8x128xf32>
    %35 = arith.maximumf %33, %34 : vector<8x128xf32>
    %c5 = arith.constant 5 : index
    %c0_22 = arith.constant 0 : index
    %36 = vector.load %arg3[%c5, %c0_22] : memref<16x128xf32, #tpu.memory_space<vmem>>, vector<1x128xf32>
    %37 = arith.truncf %35 : vector<8x128xf32> to vector<8x128xbf16>
    %c3_23 = arith.constant 3 : index
    %c0_24 = arith.constant 0 : index
    %c0_25 = arith.constant 0 : index
    %38 = vector.load %arg2[%c3_23, %c0_24, %c0_25] : memref<8x128x128xbf16, #tpu.memory_space<vmem>>, vector<1x128x128xbf16>
    %39 = vector.shape_cast %38 : vector<1x128x128xbf16> to vector<128x128xbf16>
    %cst_26 = arith.constant dense<0.000000e+00> : vector<8x128xf32>
    %40 = tpu.matmul %37, %39, %cst_26 {dimension_numbers = #tpu.dot_dimension_numbers<[1], [0], [0], [1], [0, 0, 1, 1], [], []>} : vector<8x128xbf16>, vector<128x128xbf16>, vector<8x128xf32> -> vector<8x128xf32>
    %41 = vector.broadcast %36 : vector<1x128xf32> to vector<8x128xf32>
    %42 = arith.addf %40, %41 : vector<8x128xf32>
    %cst_27 = arith.constant 0.000000e+00 : f32
    %43 = vector.broadcast %cst_27 : f32 to vector<8x128xf32>
    %44 = arith.maximumf %42, %43 : vector<8x128xf32>
    %c6 = arith.constant 6 : index
    %c0_28 = arith.constant 0 : index
    %45 = vector.load %arg3[%c6, %c0_28] : memref<16x128xf32, #tpu.memory_space<vmem>>, vector<1x128xf32>
    %46 = arith.truncf %44 : vector<8x128xf32> to vector<8x128xbf16>
    %c4_29 = arith.constant 4 : index
    %c0_30 = arith.constant 0 : index
    %c0_31 = arith.constant 0 : index
    %47 = vector.load %arg2[%c4_29, %c0_30, %c0_31] : memref<8x128x128xbf16, #tpu.memory_space<vmem>>, vector<1x128x128xbf16>
    %48 = vector.shape_cast %47 : vector<1x128x128xbf16> to vector<128x128xbf16>
    %cst_32 = arith.constant dense<0.000000e+00> : vector<8x128xf32>
    %49 = tpu.matmul %46, %48, %cst_32 {dimension_numbers = #tpu.dot_dimension_numbers<[1], [0], [0], [1], [0, 0, 1, 1], [], []>} : vector<8x128xbf16>, vector<128x128xbf16>, vector<8x128xf32> -> vector<8x128xf32>
    %50 = vector.broadcast %45 : vector<1x128xf32> to vector<8x128xf32>
    %51 = arith.addf %49, %50 : vector<8x128xf32>
    %cst_33 = arith.constant 0.000000e+00 : f32
    %52 = vector.broadcast %cst_33 : f32 to vector<8x128xf32>
    %53 = arith.maximumf %51, %52 : vector<8x128xf32>
    %c7 = arith.constant 7 : index
    %c0_34 = arith.constant 0 : index
    %54 = vector.load %arg3[%c7, %c0_34] : memref<16x128xf32, #tpu.memory_space<vmem>>, vector<1x128xf32>
    %55 = arith.truncf %53 : vector<8x128xf32> to vector<8x128xbf16>
    %c5_35 = arith.constant 5 : index
    %c0_36 = arith.constant 0 : index
    %c0_37 = arith.constant 0 : index
    %56 = vector.load %arg2[%c5_35, %c0_36, %c0_37] : memref<8x128x128xbf16, #tpu.memory_space<vmem>>, vector<1x128x128xbf16>
    %57 = vector.shape_cast %56 : vector<1x128x128xbf16> to vector<128x128xbf16>
    %cst_38 = arith.constant dense<0.000000e+00> : vector<8x128xf32>
    %58 = tpu.matmul %55, %57, %cst_38 {dimension_numbers = #tpu.dot_dimension_numbers<[1], [0], [0], [1], [0, 0, 1, 1], [], []>} : vector<8x128xbf16>, vector<128x128xbf16>, vector<8x128xf32> -> vector<8x128xf32>
    %59 = vector.broadcast %54 : vector<1x128xf32> to vector<8x128xf32>
    %60 = arith.addf %58, %59 : vector<8x128xf32>
    %cst_39 = arith.constant 0.000000e+00 : f32
    %61 = vector.broadcast %cst_39 : f32 to vector<8x128xf32>
    %62 = arith.maximumf %60, %61 : vector<8x128xf32>
    %c8 = arith.constant 8 : index
    %c0_40 = arith.constant 0 : index
    %63 = vector.load %arg3[%c8, %c0_40] : memref<16x128xf32, #tpu.memory_space<vmem>>, vector<1x128xf32>
    %64 = arith.truncf %62 : vector<8x128xf32> to vector<8x128xbf16>
    %c6_41 = arith.constant 6 : index
    %c0_42 = arith.constant 0 : index
    %c0_43 = arith.constant 0 : index
    %65 = vector.load %arg2[%c6_41, %c0_42, %c0_43] : memref<8x128x128xbf16, #tpu.memory_space<vmem>>, vector<1x128x128xbf16>
    %66 = vector.shape_cast %65 : vector<1x128x128xbf16> to vector<128x128xbf16>
    %cst_44 = arith.constant dense<0.000000e+00> : vector<8x128xf32>
    %67 = tpu.matmul %64, %66, %cst_44 {dimension_numbers = #tpu.dot_dimension_numbers<[1], [0], [0], [1], [0, 0, 1, 1], [], []>} : vector<8x128xbf16>, vector<128x128xbf16>, vector<8x128xf32> -> vector<8x128xf32>
    %68 = vector.broadcast %63 : vector<1x128xf32> to vector<8x128xf32>
    %69 = arith.addf %67, %68 : vector<8x128xf32>
    %cst_45 = arith.constant 0.000000e+00 : f32
    %70 = vector.broadcast %cst_45 : f32 to vector<8x128xf32>
    %71 = arith.maximumf %69, %70 : vector<8x128xf32>
    %c9 = arith.constant 9 : index
    %c0_46 = arith.constant 0 : index
    %72 = vector.load %arg3[%c9, %c0_46] : memref<16x128xf32, #tpu.memory_space<vmem>>, vector<1x128xf32>
    %73 = arith.truncf %71 : vector<8x128xf32> to vector<8x128xbf16>
    %c7_47 = arith.constant 7 : index
    %c0_48 = arith.constant 0 : index
    %c0_49 = arith.constant 0 : index
    %74 = vector.load %arg2[%c7_47, %c0_48, %c0_49] : memref<8x128x128xbf16, #tpu.memory_space<vmem>>, vector<1x128x128xbf16>
    %75 = vector.shape_cast %74 : vector<1x128x128xbf16> to vector<128x128xbf16>
    %cst_50 = arith.constant dense<0.000000e+00> : vector<8x128xf32>
    %76 = tpu.matmul %73, %75, %cst_50 {dimension_numbers = #tpu.dot_dimension_numbers<[1], [0], [0], [1], [0, 0, 1, 1], [], []>} : vector<8x128xbf16>, vector<128x128xbf16>, vector<8x128xf32> -> vector<8x128xf32>
    %77 = vector.broadcast %72 : vector<1x128xf32> to vector<8x128xf32>
    %78 = arith.addf %76, %77 : vector<8x128xf32>
    %c0_51 = arith.constant 0 : index
    %c0_52 = arith.constant 0 : index
    %79 = vector.load %arg4[%c0_51, %c0_52] : memref<8x128xf32, #tpu.memory_space<vmem>>, vector<8x128xf32>
    tpu.vector_store %arg4[%c0_51, %c0_52], %78 {strides = array<i32>} : memref<8x128xf32, #tpu.memory_space<vmem>>, vector<8x128xf32>,
    return
  }
  func.func @transform_0(%arg0: i32) -> (i32, i32) {
    %c0_i32 = arith.constant 0 : i32
    %c0_i32_0 = arith.constant 0 : i32
    return %arg0, %c0_i32 : i32, i32
  }
  func.func @transform_1(%arg0: i32) -> (i32, i32, i32) {
    %c0_i32 = arith.constant 0 : i32
    %c0_i32_0 = arith.constant 0 : i32
    %c0_i32_1 = arith.constant 0 : i32
    %c0_i32_2 = arith.constant 0 : i32
    return %c0_i32, %c0_i32_0, %c0_i32_1 : i32, i32, i32
  }
  func.func @transform_2(%arg0: i32) -> (i32, i32) {
    %c0_i32 = arith.constant 0 : i32
    %c0_i32_0 = arith.constant 0 : i32
    %c0_i32_1 = arith.constant 0 : i32
    return %c0_i32, %c0_i32_0 : i32, i32
  }
  func.func @transform_3(%arg0: i32) -> (i32, i32) {
    %c0_i32 = arith.constant 0 : i32
    %c0_i32_0 = arith.constant 0 : i32
    return %arg0, %c0_i32 : i32, i32
  }
}

</mosaic_0001>

<llo_original>
// kernel: _embedding_net_call.1
$region0: #{_embedding_net_call.1}
  #allocation0 [shape = 'u32[]', space=smem, size = 0x4, offset = 0x4, fixed_abs, tag = 'smem constant byte address 0x4 - core index']
  #allocation1 [shape = 'u32[72,128]{1,0:T(1,128)}', space=vmem, size = 0x9000, scoped, tag = 'internal scratch']
  %s0 = inlined_call_operand.hbm [shape: f32[16,128], index: 0, kind: input, shape index: {}]
  %s1 = inlined_call_operand.hbm [shape: bf16[8,128,128], index: 1, kind: input, shape index: {}]
  %s2 = inlined_call_operand.hbm [shape: f32[16,128], index: 2, kind: input, shape index: {}]
  %s3 = inlined_call_operand.hbm [shape: f32[16,128], index: 3, kind: output, shape index: {}]
  %s4 = sld [smem:[#allocation0]]
  $region57: #{_embedding_net_call.1} parent=0
    _
  %s6 = ssub.s32 1, %s4
  %s7 = scalar_select 0, %s6, %s4
  $region1: #{_embedding_net_call.1} parent=0
    #allocation2 [shape = 'u8[8192]{0}', space=vmem, size = 0x2000, scoped, tag = 'input window, operand 0']
    #allocation3 [shape = 's32[2]{0}', space=sflag, size = 0x8, scoped, tag = 'scoped memory for _embedding_net_call.1']
    #allocation4 [shape = 's32[2]{0}', space=sflag, size = 0x8, scoped, tag = 'scoped memory for _embedding_net_call.1']
    #allocation5 [shape = 'u8[262144]{0}', space=vmem, size = 0x40000, scoped, tag = 'input window, operand 1, single buffered']
    #allocation6 [shape = 's32[1]{0}', space=sflag, size = 0x4, scoped, tag = 'scoped memory for _embedding_net_call.1']
    #allocation7 [shape = 'u8[8192]{0}', space=vmem, size = 0x2000, scoped, tag = 'input window, operand 2, single buffered']
    #allocation8 [shape = 'u8[8192]{0}', space=vmem, size = 0x2000, scoped, tag = 'output window, operand 0']
    %8 = vsyncpa [#allocation3], 0
    %s9 = scalar_lea.sflag [#allocation3], 1
    %10 = vsyncpa %s9, 0
    %11 = vsyncpa [#allocation6], 0
    %12 = vsyncpa [#allocation4], 0
    %s13 = scalar_lea.sflag [#allocation4], 1
    %14 = vsyncpa %s13, 0
    loop: start=0, step=1, limit=4
    $region2: #{_embedding_net_call.1} parent=1 // loop_pre_header
      _
    $region3: #{_embedding_net_call.1} parent=1 // loop_header
      %s16 = sphi 0, %s20
      %p17 = scmp.ge.s32.totalorder %s16, 4
      %s26 = sphi 0, %s28
      %s29 = sphi 0, %s26
      %s30 = sphi 0, %s29
      %s46 = sphi 0, %s30
      %s50 = sphi 0, %s50
      %s52 = sphi 0, %s50
      %s53 = sphi 0, %s52
      %s67 = sphi 0, %s53
      %s71 = sphi 0, %s71
      %s73 = sphi 0, %s71
      %s74 = sphi 0, %s73
      %s88 = sphi 0, %s74
      %s94 = sphi 0, %s96
      %s97 = sphi 0, %s94
      %s98 = sphi 0, %s97
      %s114 = sphi 0, %s98
    $region4: #{_embedding_net_call.1} parent=1 // loop_header_branch
      %19 = sbr.rel (%p17) target = $region8
    $region5: #{_embedding_net_call.1} parent=1 // loop_body
      %s21 = ssub.s32 %s16, 1
      %s22 = ssub.s32 %s16, 2
      %s23 = sadd.s32 %s16, 1
      %s24 = ssub.s32 %s16, %s23
      %p25 = scmp.eq.s32.totalorder %s24, 0
      %s27 = sadd.s32 %s26, 1
      %s28 = scalar_select %p25, %s26, %s27
      %p31 = pneg %p25
      %p32 = scmp.eq.s32.totalorder %s16, 1
      %p33 = por %p31, %p32
      %p34 = scmp.ne.s32.totalorder %s26, %s29
      %p35 = scmp.eq.s32.totalorder %s16, 0
      %p36 = por %p34, %p35
      %p37 = scmp.ne.s32.totalorder %s26, %s29
      %p38 = scmp.eq.s32.totalorder %s21, 1
      %p39 = por %p37, %p38
      %p40 = scmp.ne.s32.totalorder %s29, %s30
      %p41 = scmp.eq.s32.totalorder %s21, 0
      %p42 = por %p40, %p41
      %p43 = scmp.ne.s32.totalorder %s29, %s30
      %p44 = scmp.eq.s32.totalorder %s22, 1
      %p45 = por %p43, %p44
      %p47 = scmp.ne.s32.totalorder %s30, %s46
      %p48 = scmp.eq.s32.totalorder %s22, 0
      %p49 = por %p47, %p48
      %s51 = sadd.s32 %s50, 1
      %p54 = scmp.eq.s32.totalorder %s16, 1
      %p55 = scmp.ne.s32.totalorder %s50, %s52
      %p56 = scmp.eq.s32.totalorder %s16, 0
      %p57 = por %p55, %p56
      %p58 = scmp.ne.s32.totalorder %s50, %s52
      %p59 = scmp.eq.s32.totalorder %s21, 1
      %p60 = por %p58, %p59
      %p61 = scmp.ne.s32.totalorder %s52, %s53
      %p62 = scmp.eq.s32.totalorder %s21, 0
      %p63 = por %p61, %p62
      %p64 = scmp.ne.s32.totalorder %s52, %s53
      %p65 = scmp.eq.s32.totalorder %s22, 1
      %p66 = por %p64, %p65
      %p68 = scmp.ne.s32.totalorder %s53, %s67
      %p69 = scmp.eq.s32.totalorder %s22, 0
      %p70 = por %p68, %p69
      %s72 = sadd.s32 %s71, 1
      %p75 = scmp.eq.s32.totalorder %s16, 1
      %p76 = scmp.ne.s32.totalorder %s71, %s73
      %p77 = scmp.eq.s32.totalorder %s16, 0
      %p78 = por %p76, %p77
      %p79 = scmp.ne.s32.totalorder %s71, %s73
      %p80 = scmp.eq.s32.totalorder %s21, 1
      %p81 = por %p79, %p80
      %p82 = scmp.ne.s32.totalorder %s73, %s74
      %p83 = scmp.eq.s32.totalorder %s21, 0
      %p84 = por %p82, %p83
      %p85 = scmp.ne.s32.totalorder %s73, %s74
      %p86 = scmp.eq.s32.totalorder %s22, 1
      %p87 = por %p85, %p86
      %p89 = scmp.ne.s32.totalorder %s74, %s88
      %p90 = scmp.eq.s32.totalorder %s22, 0
      %p91 = por %p89, %p90
      %s92 = ssub.s32 %s16, %s23
      %p93 = scmp.eq.s32.totalorder %s92, 0
      %s95 = sadd.s32 %s94, 1
      %s96 = scalar_select %p93, %s94, %s95
      %p99 = pneg %p93
      %p100 = scmp.eq.s32.totalorder %s16, 1
      %p101 = por %p99, %p100
      %p102 = scmp.ne.s32.totalorder %s94, %s97
      %p103 = scmp.eq.s32.totalorder %s16, 0
      %p104 = por %p102, %p103
      %p105 = scmp.ne.s32.totalorder %s94, %s97
      %p106 = scmp.eq.s32.totalorder %s21, 1
      %p107 = por %p105, %p106
      %p108 = scmp.ne.s32.totalorder %s97, %s98
      %p109 = scmp.eq.s32.totalorder %s21, 0
      %p110 = por %p108, %p109
      %p111 = scmp.ne.s32.totalorder %s97, %s98
      %p112 = scmp.eq.s32.totalorder %s22, 1
      %p113 = por %p111, %p112
      %p115 = scmp.ne.s32.totalorder %s98, %s114
      %p116 = scmp.eq.s32.totalorder %s22, 0
      %p117 = por %p115, %p116
      %p118 = scmp.le.s32.totalorder 1, %s16
      %p119 = scmp.lt.s32.totalorder %s16, 3
      %p120 = pnand %p118, %p119
      %p121 = pneg %p120
      // Predicated region
      $region9: #{_embedding_net_call.1} parent=5 // pred_check
        _
      $region10: #{_embedding_net_call.1} parent=5 // pred_check_branch
        %123 = sbr.rel (%p120) target = $region12
      $region11: #{_embedding_net_call.1} parent=5 // pred_region
        %s124 = ssub.s32 %s16, 1
        // Predicated region
        $region13: #{_embedding_net_call.1} parent=11 // pred_check
          %p125 = pneg %p63
        $region14: #{_embedding_net_call.1} parent=11 // pred_check_branch
          %127 = sbr.rel (%p125) target = $region16
        $region15: #{_embedding_net_call.1} parent=11 // pred_region
          %129 = vsyncadd [#allocation6], 0
          %s130 = sshll.u32 %s1, 4
          %s131 = int_to_ptr.hbm [resolvable:$true] %s130
          %s132 = sshll.u32 [#allocation5], 4
          %s133 = int_to_ptr.vmem [resolvable:$true] %s132
          %138 = dma.hbm_to_vmem [thread:$0]  %s131, 8192, %s133, [#allocation6], 64, 64, 4
        $region16: #{_embedding_net_call.1} parent=11 // pred_fallthru
          _
        // Predicated region
        $region17: #{_embedding_net_call.1} parent=11 // pred_check
          %p139 = pneg %p84
        $region18: #{_embedding_net_call.1} parent=11 // pred_check_branch
          %141 = sbr.rel (%p139) target = $region20
        $region19: #{_embedding_net_call.1} parent=11 // pred_region
          %143 = vsyncadd [#allocation6], 0
          %s144 = sshll.u32 %s2, 4
          %s145 = int_to_ptr.hbm [resolvable:$true] %s144
          %s146 = sshll.u32 [#allocation7], 4
          %s147 = int_to_ptr.vmem [resolvable:$true] %s146
          %152 = dma.hbm_to_vmem [thread:$0]  %s145, 256, %s147, [#allocation6], 128, 128, 8
        $region20: #{_embedding_net_call.1} parent=11 // pred_fallthru
          _
      $region12: #{_embedding_net_call.1} parent=5 // pred_fallthru
        _
      %p153 = scmp.lt.s32.totalorder %s16, 2
      // Predicated region
      $region21: #{_embedding_net_call.1} parent=5 // pred_check
        %p154 = pneg %p153
      $region22: #{_embedding_net_call.1} parent=5 // pred_check_branch
        %156 = sbr.rel (%p154) target = $region24
      $region23: #{_embedding_net_call.1} parent=5 // pred_region
        // Predicated region
        $region25: #{_embedding_net_call.1} parent=23 // pred_check
          %p157 = pneg %p36
        $region26: #{_embedding_net_call.1} parent=23 // pred_check_branch
          %159 = sbr.rel (%p157) target = $region28
        $region27: #{_embedding_net_call.1} parent=23 // pred_region
          %s160 = sand.u32 %s26, 1
          %s161 = scalar_lea.sflag [#allocation3], %s160
          %s162 = sand.u32 %s26, 1
          %s163 = smul.addr %s162, 8
          %s164 = scalar_lea.vmem [#allocation2], %s163
          %166 = vsyncadd %s161, 0
          %s167 = smul.addr %s16, 8
          %s168 = scalar_lea.hbm %s0, %s167
          %s170 = sshll.u32 %s168, 4
          %s171 = int_to_ptr.hbm [resolvable:$true] %s170
          %s172 = sshll.u32 %s164, 4
          %s173 = int_to_ptr.vmem [resolvable:$true] %s172
          %175 = dma.hbm_to_vmem [thread:$0]  %s171, 128, %s173, %s161
        $region28: #{_embedding_net_call.1} parent=23 // pred_fallthru
          _
      $region24: #{_embedding_net_call.1} parent=5 // pred_fallthru
        _
      %p176 = scmp.le.s32.totalorder 1, %s16
      %p177 = scmp.lt.s32.totalorder %s16, 3
      %p178 = pnand %p176, %p177
      %p179 = pneg %p178
      // Predicated region
      $region29: #{_embedding_net_call.1} parent=5 // pred_check
        _
      $region30: #{_embedding_net_call.1} parent=5 // pred_check_branch
        %181 = sbr.rel (%p178) target = $region32
      $region31: #{_embedding_net_call.1} parent=5 // pred_region
        %s182 = ssub.s32 %s16, 1
        %s183 = sand.u32 %s29, 1
        %s184 = scalar_lea.sflag [#allocation3], %s183
        %s185 = sand.u32 %s29, 1
        %s186 = smul.addr %s185, 8
        %s187 = scalar_lea.vmem [#allocation2], %s186
        // Predicated region
        $region33: #{_embedding_net_call.1} parent=31 // pred_check
          %p188 = pneg %p42
        $region34: #{_embedding_net_call.1} parent=31 // pred_check_branch
          %190 = sbr.rel (%p188) target = $region36
        $region35: #{_embedding_net_call.1} parent=31 // pred_region
          %192 = dma.done %s184, 128
        $region36: #{_embedding_net_call.1} parent=31 // pred_fallthru
          _
        // Predicated region
        $region37: #{_embedding_net_call.1} parent=31 // pred_check
          %p193 = pneg %p63
        $region38: #{_embedding_net_call.1} parent=31 // pred_check_branch
          %195 = sbr.rel (%p193) target = $region40
        $region39: #{_embedding_net_call.1} parent=31 // pred_region
          %197 = dma.done [#allocation6], 8192
        $region40: #{_embedding_net_call.1} parent=31 // pred_fallthru
          _
        // Predicated region
        $region41: #{_embedding_net_call.1} parent=31 // pred_check
          %p198 = pneg %p84
        $region42: #{_embedding_net_call.1} parent=31 // pred_check_branch
          %200 = sbr.rel (%p198) target = $region44
        $region43: #{_embedding_net_call.1} parent=31 // pred_region
          %202 = dma.done [#allocation6], 256
        $region44: #{_embedding_net_call.1} parent=31 // pred_fallthru
          _
        %s203 = sand.u32 %s29, 1
        %s204 = scalar_lea.sflag [#allocation3], %s203
        %s205 = sand.u32 %s29, 1
        %s206 = smul.addr %s205, 8
        %s207 = scalar_lea.vmem [#allocation2], %s206
        %p208 = pneg %p42
        %p209 = pneg %p39
        %p210 = pneg %p63
        %p211 = pneg %p60
        %p212 = pneg %p84
        %p213 = pneg %p81
        %p214 = pneg %p110
        %p215 = pneg %p107
        %s216 = sand.u32 %s97, 1
        %s217 = scalar_lea.sflag [#allocation4], %s216
        %s218 = sand.u32 %s97, 1
        %s219 = smul.addr %s218, 8
        %s220 = scalar_lea.vmem [#allocation8], %s219
        %v221 = vld [vmem:[#allocation7] sm:$0x1]
        %v222 = vld [vmem:[#allocation7 + $0x1] sm:$0x1]
        %v223 = vld [vmem:[%s187] sm:$0xff]
        %v224 = vperm.slane %v221, 0
        %v225 = vmul.f32 %v223, %v224
        %v226 = vperm.slane %v222, 0
        %v227 = vadd.f32 %v225, %v226
        %v228 = vmax.f32 %v227, 0.0
        %v229 = vld [vmem:[#allocation7 + $0x2] sm:$0x1]
        %v230 = vpack.c.bf16 %v228, %v228
        %v231 = vld [vmem:[#allocation5] sm:$0xf]
        %v232 = vld [vmem:[#allocation5 + $0x4] sm:$0xf]
        %v233 = vld [vmem:[#allocation5 + $0x8] sm:$0xf]
        %v234 = vld [vmem:[#allocation5 + $0xc] sm:$0xf]
        %v235 = vld [vmem:[#allocation5 + $0x10] sm:$0xf]
        %v236 = vld [vmem:[#allocation5 + $0x14] sm:$0xf]
        %v237 = vld [vmem:[#allocation5 + $0x18] sm:$0xf]
        %v238 = vld [vmem:[#allocation5 + $0x1c] sm:$0xf]
        %v239 = vld [vmem:[#allocation5 + $0x20] sm:$0xf]
        %v240 = vld [vmem:[#allocation5 + $0x24] sm:$0xf]
        %v241 = vld [vmem:[#allocation5 + $0x28] sm:$0xf]
        %v242 = vld [vmem:[#allocation5 + $0x2c] sm:$0xf]
        %v243 = vld [vmem:[#allocation5 + $0x30] sm:$0xf]
        %v244 = vld [vmem:[#allocation5 + $0x34] sm:$0xf]
        %v245 = vld [vmem:[#allocation5 + $0x38] sm:$0xf]
        %v246 = vld [vmem:[#allocation5 + $0x3c] sm:$0xf]
        %v247 = vperm.slane %v229, 0
        %v264 = vunpack.c.l.b16 %v231
        %v265 = vunpack.c.l.b16 %v232
        %v266 = vunpack.c.l.b16 %v233
        %v267 = vunpack.c.l.b16 %v234
        %v268 = vunpack.c.l.b16 %v235
        %v269 = vunpack.c.l.b16 %v236
        %v270 = vunpack.c.l.b16 %v237
        %v271 = vunpack.c.l.b16 %v238
        %v272 = vunpack.c.l.b16 %v239
        %v273 = vunpack.c.l.b16 %v240
        %v274 = vunpack.c.l.b16 %v241
        %v275 = vunpack.c.l.b16 %v242
        %v276 = vunpack.c.l.b16 %v243
        %v277 = vunpack.c.l.b16 %v244
        %v278 = vunpack.c.l.b16 %v245
        %v279 = vunpack.c.l.b16 %v246
        %v280 = vpack.c.b16 %v265, %v264
        %v281 = vpack.c.b16 %v267, %v266
        %v282 = vpack.c.b16 %v269, %v268
        %v283 = vpack.c.b16 %v271, %v270
        %v284 = vpack.c.b16 %v273, %v272
        %v285 = vpack.c.b16 %v275, %v274
        %v286 = vpack.c.b16 %v277, %v276
        %v287 = vpack.c.b16 %v279, %v278
        %296 = vmatpush.bf16.msra.mxu0 %v287
        %297 = vmatpush.bf16.msra.mxu0 %v286
        %298 = vmatpush.bf16.msra.mxu0 %v285
        %299 = vmatpush.bf16.msra.mxu0 %v284
        %300 = vmatpush.bf16.msra.mxu0 %v283
        %301 = vmatpush.bf16.msra.mxu0 %v282
        %302 = vmatpush.bf16.msra.mxu0 %v281
        %303 = vmatpush.bf16.msra.mxu0 %v280
        %304 = vmatmul.bf16.gmra.mxu0 %v230
        %v305 = vpop.f32.mrf.mxu0
        %v306 = vadd.f32 %v247, %v305
        %v307 = vpop.f32.mrf.mxu0
        %308 = vdwg.mxu0
        %v309 = vmax.f32 %v306, 0.0
        %v310 = vld [vmem:[#allocation7 + $0x3] sm:$0x1]
        %v311 = vpack.c.bf16 %v309, %v309
        %s312 = scalar_lea.vmem [#allocation5], 64
        %v313 = vld [vmem:[%s312] sm:$0xf]
        %v314 = vld [vmem:[%s312 + $0x4] sm:$0xf]
        %v315 = vld [vmem:[%s312 + $0x8] sm:$0xf]
        %v316 = vld [vmem:[%s312 + $0xc] sm:$0xf]
        %v317 = vld [vmem:[%s312 + $0x10] sm:$0xf]
        %v318 = vld [vmem:[%s312 + $0x14] sm:$0xf]
        %v319 = vld [vmem:[%s312 + $0x18] sm:$0xf]
        %v320 = vld [vmem:[%s312 + $0x1c] sm:$0xf]
        %v321 = vld [vmem:[%s312 + $0x20] sm:$0xf]
        %v322 = vld [vmem:[%s312 + $0x24] sm:$0xf]
        %v323 = vld [vmem:[%s312 + $0x28] sm:$0xf]
        %v324 = vld [vmem:[%s312 + $0x2c] sm:$0xf]
        %v325 = vld [vmem:[%s312 + $0x30] sm:$0xf]
        %v326 = vld [vmem:[%s312 + $0x34] sm:$0xf]
        %v327 = vld [vmem:[%s312 + $0x38] sm:$0xf]
        %v328 = vld [vmem:[%s312 + $0x3c] sm:$0xf]
        %v329 = vperm.slane %v310, 0
        %v346 = vunpack.c.l.b16 %v313
        %v347 = vunpack.c.l.b16 %v314
        %v348 = vunpack.c.l.b16 %v315
        %v349 = vunpack.c.l.b16 %v316
        %v350 = vunpack.c.l.b16 %v317
        %v351 = vunpack.c.l.b16 %v318
        %v352 = vunpack.c.l.b16 %v319
        %v353 = vunpack.c.l.b16 %v320
        %v354 = vunpack.c.l.b16 %v321
        %v355 = vunpack.c.l.b16 %v322
        %v356 = vunpack.c.l.b16 %v323
        %v357 = vunpack.c.l.b16 %v324
        %v358 = vunpack.c.l.b16 %v325
        %v359 = vunpack.c.l.b16 %v326
        %v360 = vunpack.c.l.b16 %v327
        %v361 = vunpack.c.l.b16 %v328
        %v362 = vpack.c.b16 %v347, %v346
        %v363 = vpack.c.b16 %v349, %v348
        %v364 = vpack.c.b16 %v351, %v350
        %v365 = vpack.c.b16 %v353, %v352
        %v366 = vpack.c.b16 %v355, %v354
        %v367 = vpack.c.b16 %v357, %v356
        %v368 = vpack.c.b16 %v359, %v358
        %v369 = vpack.c.b16 %v361, %v360
        %378 = vmatpush.bf16.msra.mxu0 %v369
        %379 = vmatpush.bf16.msra.mxu0 %v368
        %380 = vmatpush.bf16.msra.mxu0 %v367
        %381 = vmatpush.bf16.msra.mxu0 %v366
        %382 = vmatpush.bf16.msra.mxu0 %v365
        %383 = vmatpush.bf16.msra.mxu0 %v364
        %384 = vmatpush.bf16.msra.mxu0 %v363
        %385 = vmatpush.bf16.msra.mxu0 %v362
        %386 = vmatmul.bf16.gmra.mxu0 %v311
        %v387 = vpop.f32.mrf.mxu0
        %v388 = vadd.f32 %v329, %v387
        %v389 = vpop.f32.mrf.mxu0
        %390 = vdwg.mxu0
        %v391 = vmax.f32 %v388, 0.0
        %v392 = vld [vmem:[#allocation7 + $0x4] sm:$0x1]
        %v393 = vpack.c.bf16 %v391, %v391
        %s394 = scalar_lea.vmem [#allocation5], 128
        %v395 = vld [vmem:[%s394] sm:$0xf]
        %v396 = vld [vmem:[%s394 + $0x4] sm:$0xf]
        %v397 = vld [vmem:[%s394 + $0x8] sm:$0xf]
        %v398 = vld [vmem:[%s394 + $0xc] sm:$0xf]
        %v399 = vld [vmem:[%s394 + $0x10] sm:$0xf]
        %v400 = vld [vmem:[%s394 + $0x14] sm:$0xf]
        %v401 = vld [vmem:[%s394 + $0x18] sm:$0xf]
        %v402 = vld [vmem:[%s394 + $0x1c] sm:$0xf]
        %v403 = vld [vmem:[%s394 + $0x20] sm:$0xf]
        %v404 = vld [vmem:[%s394 + $0x24] sm:$0xf]
        %v405 = vld [vmem:[%s394 + $0x28] sm:$0xf]
        %v406 = vld [vmem:[%s394 + $0x2c] sm:$0xf]
        %v407 = vld [vmem:[%s394 + $0x30] sm:$0xf]
        %v408 = vld [vmem:[%s394 + $0x34] sm:$0xf]
        %v409 = vld [vmem:[%s394 + $0x38] sm:$0xf]
        %v410 = vld [vmem:[%s394 + $0x3c] sm:$0xf]
        %v411 = vperm.slane %v392, 0
        %v428 = vunpack.c.l.b16 %v395
        %v429 = vunpack.c.l.b16 %v396
        %v430 = vunpack.c.l.b16 %v397
        %v431 = vunpack.c.l.b16 %v398
        %v432 = vunpack.c.l.b16 %v399
        %v433 = vunpack.c.l.b16 %v400
        %v434 = vunpack.c.l.b16 %v401
        %v435 = vunpack.c.l.b16 %v402
        %v436 = vunpack.c.l.b16 %v403
        %v437 = vunpack.c.l.b16 %v404
        %v438 = vunpack.c.l.b16 %v405
        %v439 = vunpack.c.l.b16 %v406
        %v440 = vunpack.c.l.b16 %v407
        %v441 = vunpack.c.l.b16 %v408
        %v442 = vunpack.c.l.b16 %v409
        %v443 = vunpack.c.l.b16 %v410
        %v444 = vpack.c.b16 %v429, %v428
        %v445 = vpack.c.b16 %v431, %v430
        %v446 = vpack.c.b16 %v433, %v432
        %v447 = vpack.c.b16 %v435, %v434
        %v448 = vpack.c.b16 %v437, %v436
        %v449 = vpack.c.b16 %v439, %v438
        %v450 = vpack.c.b16 %v441, %v440
        %v451 = vpack.c.b16 %v443, %v442
        %460 = vmatpush.bf16.msra.mxu0 %v451
        %461 = vmatpush.bf16.msra.mxu0 %v450
        %462 = vmatpush.bf16.msra.mxu0 %v449
        %463 = vmatpush.bf16.msra.mxu0 %v448
        %464 = vmatpush.bf16.msra.mxu0 %v447
        %465 = vmatpush.bf16.msra.mxu0 %v446
        %466 = vmatpush.bf16.msra.mxu0 %v445
        %467 = vmatpush.bf16.msra.mxu0 %v444
        %468 = vmatmul.bf16.gmra.mxu0 %v393
        %v469 = vpop.f32.mrf.mxu0
        %v470 = vadd.f32 %v411, %v469
        %v471 = vpop.f32.mrf.mxu0
        %472 = vdwg.mxu0
        %v473 = vmax.f32 %v470, 0.0
        %v474 = vld [vmem:[#allocation7 + $0x5] sm:$0x1]
        %v475 = vpack.c.bf16 %v473, %v473
        %s476 = scalar_lea.vmem [#allocation5], 192
        %v477 = vld [vmem:[%s476] sm:$0xf]
        %v478 = vld [vmem:[%s476 + $0x4] sm:$0xf]
        %v479 = vld [vmem:[%s476 + $0x8] sm:$0xf]
        %v480 = vld [vmem:[%s476 + $0xc] sm:$0xf]
        %v481 = vld [vmem:[%s476 + $0x10] sm:$0xf]
        %v482 = vld [vmem:[%s476 + $0x14] sm:$0xf]
        %v483 = vld [vmem:[%s476 + $0x18] sm:$0xf]
        %v484 = vld [vmem:[%s476 + $0x1c] sm:$0xf]
        %v485 = vld [vmem:[%s476 + $0x20] sm:$0xf]
        %v486 = vld [vmem:[%s476 + $0x24] sm:$0xf]
        %v487 = vld [vmem:[%s476 + $0x28] sm:$0xf]
        %v488 = vld [vmem:[%s476 + $0x2c] sm:$0xf]
        %v489 = vld [vmem:[%s476 + $0x30] sm:$0xf]
        %v490 = vld [vmem:[%s476 + $0x34] sm:$0xf]
        %v491 = vld [vmem:[%s476 + $0x38] sm:$0xf]
        %v492 = vld [vmem:[%s476 + $0x3c] sm:$0xf]
        %v493 = vperm.slane %v474, 0
        %v510 = vunpack.c.l.b16 %v477
        %v511 = vunpack.c.l.b16 %v478
        %v512 = vunpack.c.l.b16 %v479
        %v513 = vunpack.c.l.b16 %v480
        %v514 = vunpack.c.l.b16 %v481
        %v515 = vunpack.c.l.b16 %v482
        %v516 = vunpack.c.l.b16 %v483
        %v517 = vunpack.c.l.b16 %v484
        %v518 = vunpack.c.l.b16 %v485
        %v519 = vunpack.c.l.b16 %v486
        %v520 = vunpack.c.l.b16 %v487
        %v521 = vunpack.c.l.b16 %v488
        %v522 = vunpack.c.l.b16 %v489
        %v523 = vunpack.c.l.b16 %v490
        %v524 = vunpack.c.l.b16 %v491
        %v525 = vunpack.c.l.b16 %v492
        %v526 = vpack.c.b16 %v511, %v510
        %v527 = vpack.c.b16 %v513, %v512
        %v528 = vpack.c.b16 %v515, %v514
        %v529 = vpack.c.b16 %v517, %v516
        %v530 = vpack.c.b16 %v519, %v518
        %v531 = vpack.c.b16 %v521, %v520
        %v532 = vpack.c.b16 %v523, %v522
        %v533 = vpack.c.b16 %v525, %v524
        %542 = vmatpush.bf16.msra.mxu0 %v533
        %543 = vmatpush.bf16.msra.mxu0 %v532
        %544 = vmatpush.bf16.msra.mxu0 %v531
        %545 = vmatpush.bf16.msra.mxu0 %v530
        %546 = vmatpush.bf16.msra.mxu0 %v529
        %547 = vmatpush.bf16.msra.mxu0 %v528
        %548 = vmatpush.bf16.msra.mxu0 %v527
        %549 = vmatpush.bf16.msra.mxu0 %v526
        %550 = vmatmul.bf16.gmra.mxu0 %v475
        %v551 = vpop.f32.mrf.mxu0
        %v552 = vadd.f32 %v493, %v551
        %v553 = vpop.f32.mrf.mxu0
        %554 = vdwg.mxu0
        %v555 = vmax.f32 %v552, 0.0
        %v556 = vld [vmem:[#allocation7 + $0x6] sm:$0x1]
        %v557 = vpack.c.bf16 %v555, %v555
        %s558 = scalar_lea.vmem [#allocation5], 256
        %v559 = vld [vmem:[%s558] sm:$0xf]
        %v560 = vld [vmem:[%s558 + $0x4] sm:$0xf]
        %v561 = vld [vmem:[%s558 + $0x8] sm:$0xf]
        %v562 = vld [vmem:[%s558 + $0xc] sm:$0xf]
        %v563 = vld [vmem:[%s558 + $0x10] sm:$0xf]
        %v564 = vld [vmem:[%s558 + $0x14] sm:$0xf]
        %v565 = vld [vmem:[%s558 + $0x18] sm:$0xf]
        %v566 = vld [vmem:[%s558 + $0x1c] sm:$0xf]
        %v567 = vld [vmem:[%s558 + $0x20] sm:$0xf]
        %v568 = vld [vmem:[%s558 + $0x24] sm:$0xf]
        %v569 = vld [vmem:[%s558 + $0x28] sm:$0xf]
        %v570 = vld [vmem:[%s558 + $0x2c] sm:$0xf]
        %v571 = vld [vmem:[%s558 + $0x30] sm:$0xf]
        %v572 = vld [vmem:[%s558 + $0x34] sm:$0xf]
        %v573 = vld [vmem:[%s558 + $0x38] sm:$0xf]
        %v574 = vld [vmem:[%s558 + $0x3c] sm:$0xf]
        %v575 = vperm.slane %v556, 0
        %v592 = vunpack.c.l.b16 %v559
        %v593 = vunpack.c.l.b16 %v560
        %v594 = vunpack.c.l.b16 %v561
        %v595 = vunpack.c.l.b16 %v562
        %v596 = vunpack.c.l.b16 %v563
        %v597 = vunpack.c.l.b16 %v564
        %v598 = vunpack.c.l.b16 %v565
        %v599 = vunpack.c.l.b16 %v566
        %v600 = vunpack.c.l.b16 %v567
        %v601 = vunpack.c.l.b16 %v568
        %v602 = vunpack.c.l.b16 %v569
        %v603 = vunpack.c.l.b16 %v570
        %v604 = vunpack.c.l.b16 %v571
        %v605 = vunpack.c.l.b16 %v572
        %v606 = vunpack.c.l.b16 %v573
        %v607 = vunpack.c.l.b16 %v574
        %v608 = vpack.c.b16 %v593, %v592
        %v609 = vpack.c.b16 %v595, %v594
        %v610 = vpack.c.b16 %v597, %v596
        %v611 = vpack.c.b16 %v599, %v598
        %v612 = vpack.c.b16 %v601, %v600
        %v613 = vpack.c.b16 %v603, %v602
        %v614 = vpack.c.b16 %v605, %v604
        %v615 = vpack.c.b16 %v607, %v606
        %624 = vmatpush.bf16.msra.mxu0 %v615
        %625 = vmatpush.bf16.msra.mxu0 %v614
        %626 = vmatpush.bf16.msra.mxu0 %v613
        %627 = vmatpush.bf16.msra.mxu0 %v612
        %628 = vmatpush.bf16.msra.mxu0 %v611
        %629 = vmatpush.bf16.msra.mxu0 %v610
        %630 = vmatpush.bf16.msra.mxu0 %v609
        %631 = vmatpush.bf16.msra.mxu0 %v608
        %632 = vmatmul.bf16.gmra.mxu0 %v557
        %v633 = vpop.f32.mrf.mxu0
        %v634 = vadd.f32 %v575, %v633
        %v635 = vpop.f32.mrf.mxu0
        %636 = vdwg.mxu0
        %v637 = vmax.f32 %v634, 0.0
        %v638 = vld [vmem:[#allocation7 + $0x7] sm:$0x1]
        %v639 = vpack.c.bf16 %v637, %v637
        %s640 = scalar_lea.vmem [#allocation5], 320
        %v641 = vld [vmem:[%s640] sm:$0xf]
        %v642 = vld [vmem:[%s640 + $0x4] sm:$0xf]
        %v643 = vld [vmem:[%s640 + $0x8] sm:$0xf]
        %v644 = vld [vmem:[%s640 + $0xc] sm:$0xf]
        %v645 = vld [vmem:[%s640 + $0x10] sm:$0xf]
        %v646 = vld [vmem:[%s640 + $0x14] sm:$0xf]
        %v647 = vld [vmem:[%s640 + $0x18] sm:$0xf]
        %v648 = vld [vmem:[%s640 + $0x1c] sm:$0xf]
        %v649 = vld [vmem:[%s640 + $0x20] sm:$0xf]
        %v650 = vld [vmem:[%s640 + $0x24] sm:$0xf]
        %v651 = vld [vmem:[%s640 + $0x28] sm:$0xf]
        %v652 = vld [vmem:[%s640 + $0x2c] sm:$0xf]
        %v653 = vld [vmem:[%s640 + $0x30] sm:$0xf]
        %v654 = vld [vmem:[%s640 + $0x34] sm:$0xf]
        %v655 = vld [vmem:[%s640 + $0x38] sm:$0xf]
        %v656 = vld [vmem:[%s640 + $0x3c] sm:$0xf]
        %v657 = vperm.slane %v638, 0
        %v674 = vunpack.c.l.b16 %v641
        %v675 = vunpack.c.l.b16 %v642
        %v676 = vunpack.c.l.b16 %v643
        %v677 = vunpack.c.l.b16 %v644
        %v678 = vunpack.c.l.b16 %v645
        %v679 = vunpack.c.l.b16 %v646
        %v680 = vunpack.c.l.b16 %v647
        %v681 = vunpack.c.l.b16 %v648
        %v682 = vunpack.c.l.b16 %v649
        %v683 = vunpack.c.l.b16 %v650
        %v684 = vunpack.c.l.b16 %v651
        %v685 = vunpack.c.l.b16 %v652
        %v686 = vunpack.c.l.b16 %v653
        %v687 = vunpack.c.l.b16 %v654
        %v688 = vunpack.c.l.b16 %v655
        %v689 = vunpack.c.l.b16 %v656
        %v690 = vpack.c.b16 %v675, %v674
        %v691 = vpack.c.b16 %v677, %v676
        %v692 = vpack.c.b16 %v679, %v678
        %v693 = vpack.c.b16 %v681, %v680
        %v694 = vpack.c.b16 %v683, %v682
        %v695 = vpack.c.b16 %v685, %v684
        %v696 = vpack.c.b16 %v687, %v686
        %v697 = vpack.c.b16 %v689, %v688
        %706 = vmatpush.bf16.msra.mxu0 %v697
        %707 = vmatpush.bf16.msra.mxu0 %v696
        %708 = vmatpush.bf16.msra.mxu0 %v695
        %709 = vmatpush.bf16.msra.mxu0 %v694
        %710 = vmatpush.bf16.msra.mxu0 %v693
        %711 = vmatpush.bf16.msra.mxu0 %v692
        %712 = vmatpush.bf16.msra.mxu0 %v691
        %713 = vmatpush.bf16.msra.mxu0 %v690
        %714 = vmatmul.bf16.gmra.mxu0 %v639
        %v715 = vpop.f32.mrf.mxu0
        %v716 = vadd.f32 %v657, %v715
        %v717 = vpop.f32.mrf.mxu0
        %718 = vdwg.mxu0
        %v719 = vmax.f32 %v716, 0.0
        %v720 = vld [vmem:[#allocation7 + $0x8] sm:$0x1]
        %v721 = vpack.c.bf16 %v719, %v719
        %s722 = scalar_lea.vmem [#allocation5], 384
        %v723 = vld [vmem:[%s722] sm:$0xf]
        %v724 = vld [vmem:[%s722 + $0x4] sm:$0xf]
        %v725 = vld [vmem:[%s722 + $0x8] sm:$0xf]
        %v726 = vld [vmem:[%s722 + $0xc] sm:$0xf]
        %v727 = vld [vmem:[%s722 + $0x10] sm:$0xf]
        %v728 = vld [vmem:[%s722 + $0x14] sm:$0xf]
        %v729 = vld [vmem:[%s722 + $0x18] sm:$0xf]
        %v730 = vld [vmem:[%s722 + $0x1c] sm:$0xf]
        %v731 = vld [vmem:[%s722 + $0x20] sm:$0xf]
        %v732 = vld [vmem:[%s722 + $0x24] sm:$0xf]
        %v733 = vld [vmem:[%s722 + $0x28] sm:$0xf]
        %v734 = vld [vmem:[%s722 + $0x2c] sm:$0xf]
        %v735 = vld [vmem:[%s722 + $0x30] sm:$0xf]
        %v736 = vld [vmem:[%s722 + $0x34] sm:$0xf]
        %v737 = vld [vmem:[%s722 + $0x38] sm:$0xf]
        %v738 = vld [vmem:[%s722 + $0x3c] sm:$0xf]
        %v739 = vperm.slane %v720, 0
        %v756 = vunpack.c.l.b16 %v723
        %v757 = vunpack.c.l.b16 %v724
        %v758 = vunpack.c.l.b16 %v725
        %v759 = vunpack.c.l.b16 %v726
        %v760 = vunpack.c.l.b16 %v727
        %v761 = vunpack.c.l.b16 %v728
        %v762 = vunpack.c.l.b16 %v729
        %v763 = vunpack.c.l.b16 %v730
        %v764 = vunpack.c.l.b16 %v731
        %v765 = vunpack.c.l.b16 %v732
        %v766 = vunpack.c.l.b16 %v733
        %v767 = vunpack.c.l.b16 %v734
        %v768 = vunpack.c.l.b16 %v735
        %v769 = vunpack.c.l.b16 %v736
        %v770 = vunpack.c.l.b16 %v737
        %v771 = vunpack.c.l.b16 %v738
        %v772 = vpack.c.b16 %v757, %v756
        %v773 = vpack.c.b16 %v759, %v758
        %v774 = vpack.c.b16 %v761, %v760
        %v775 = vpack.c.b16 %v763, %v762
        %v776 = vpack.c.b16 %v765, %v764
        %v777 = vpack.c.b16 %v767, %v766
        %v778 = vpack.c.b16 %v769, %v768
        %v779 = vpack.c.b16 %v771, %v770
        %788 = vmatpush.bf16.msra.mxu0 %v779
        %789 = vmatpush.bf16.msra.mxu0 %v778
        %790 = vmatpush.bf16.msra.mxu0 %v777
        %791 = vmatpush.bf16.msra.mxu0 %v776
        %792 = vmatpush.bf16.msra.mxu0 %v775
        %793 = vmatpush.bf16.msra.mxu0 %v774
        %794 = vmatpush.bf16.msra.mxu0 %v773
        %795 = vmatpush.bf16.msra.mxu0 %v772
        %796 = vmatmul.bf16.gmra.mxu0 %v721
        %v797 = vpop.f32.mrf.mxu0
        %v798 = vadd.f32 %v739, %v797
        %v799 = vpop.f32.mrf.mxu0
        %800 = vdwg.mxu0
        %v801 = vmax.f32 %v798, 0.0
        %v802 = vld [vmem:[#allocation7 + $0x9] sm:$0x1]
        %v803 = vpack.c.bf16 %v801, %v801
        %s804 = scalar_lea.vmem [#allocation5], 448
        %v805 = vld [vmem:[%s804] sm:$0xf]
        %v806 = vld [vmem:[%s804 + $0x4] sm:$0xf]
        %v807 = vld [vmem:[%s804 + $0x8] sm:$0xf]
        %v808 = vld [vmem:[%s804 + $0xc] sm:$0xf]
        %v809 = vld [vmem:[%s804 + $0x10] sm:$0xf]
        %v810 = vld [vmem:[%s804 + $0x14] sm:$0xf]
        %v811 = vld [vmem:[%s804 + $0x18] sm:$0xf]
        %v812 = vld [vmem:[%s804 + $0x1c] sm:$0xf]
        %v813 = vld [vmem:[%s804 + $0x20] sm:$0xf]
        %v814 = vld [vmem:[%s804 + $0x24] sm:$0xf]
        %v815 = vld [vmem:[%s804 + $0x28] sm:$0xf]
        %v816 = vld [vmem:[%s804 + $0x2c] sm:$0xf]
        %v817 = vld [vmem:[%s804 + $0x30] sm:$0xf]
        %v818 = vld [vmem:[%s804 + $0x34] sm:$0xf]
        %v819 = vld [vmem:[%s804 + $0x38] sm:$0xf]
        %v820 = vld [vmem:[%s804 + $0x3c] sm:$0xf]
        %v821 = vperm.slane %v802, 0
        %v838 = vunpack.c.l.b16 %v805
        %v839 = vunpack.c.l.b16 %v806
        %v840 = vunpack.c.l.b16 %v807
        %v841 = vunpack.c.l.b16 %v808
        %v842 = vunpack.c.l.b16 %v809
        %v843 = vunpack.c.l.b16 %v810
        %v844 = vunpack.c.l.b16 %v811
        %v845 = vunpack.c.l.b16 %v812
        %v846 = vunpack.c.l.b16 %v813
        %v847 = vunpack.c.l.b16 %v814
        %v848 = vunpack.c.l.b16 %v815
        %v849 = vunpack.c.l.b16 %v816
        %v850 = vunpack.c.l.b16 %v817
        %v851 = vunpack.c.l.b16 %v818
        %v852 = vunpack.c.l.b16 %v819
        %v853 = vunpack.c.l.b16 %v820
        %v854 = vpack.c.b16 %v839, %v838
        %v855 = vpack.c.b16 %v841, %v840
        %v856 = vpack.c.b16 %v843, %v842
        %v857 = vpack.c.b16 %v845, %v844
        %v858 = vpack.c.b16 %v847, %v846
        %v859 = vpack.c.b16 %v849, %v848
        %v860 = vpack.c.b16 %v851, %v850
        %v861 = vpack.c.b16 %v853, %v852
        %870 = vmatpush.bf16.msra.mxu0 %v861
        %871 = vmatpush.bf16.msra.mxu0 %v860
        %872 = vmatpush.bf16.msra.mxu0 %v859
        %873 = vmatpush.bf16.msra.mxu0 %v858
        %874 = vmatpush.bf16.msra.mxu0 %v857
        %875 = vmatpush.bf16.msra.mxu0 %v856
        %876 = vmatpush.bf16.msra.mxu0 %v855
        %877 = vmatpush.bf16.msra.mxu0 %v854
        %878 = vmatmul.bf16.gmra.mxu0 %v803
        %v879 = vpop.f32.mrf.mxu0
        %v880 = vadd.f32 %v821, %v879
        %v881 = vpop.f32.mrf.mxu0
        %882 = vdwg.mxu0
        %883 = vst [vmem:[%s220] sm:$0xff] %v880
        %s884 = sand.u32 %s97, 1
        %s885 = scalar_lea.sflag [#allocation4], %s884
        %s886 = sand.u32 %s97, 1
        %s887 = smul.addr %s886, 8
        %s888 = scalar_lea.vmem [#allocation8], %s887
        // Predicated region
        $region45: #{_embedding_net_call.1} parent=31 // pred_check
          %p889 = pneg %p107
        $region46: #{_embedding_net_call.1} parent=31 // pred_check_branch
          %891 = sbr.rel (%p889) target = $region48
        $region47: #{_embedding_net_call.1} parent=31 // pred_region
          %893 = vsyncadd %s885, 0
          %s894 = smul.addr %s21, 8
          %s895 = scalar_lea.hbm %s3, %s894
          %s897 = sshll.u32 %s888, 4
          %s898 = int_to_ptr.vmem [resolvable:$true] %s897
          %s899 = sshll.u32 %s895, 4
          %s900 = int_to_ptr.hbm [resolvable:$true] %s899
          %902 = dma.vmem_to_hbm [thread:$0]  %s898, 128, %s900, %s885
        $region48: #{_embedding_net_call.1} parent=31 // pred_fallthru
          _
      $region32: #{_embedding_net_call.1} parent=5 // pred_fallthru
        _
      %p903 = scmp.le.s32.totalorder 2, %s16
      // Predicated region
      $region49: #{_embedding_net_call.1} parent=5 // pred_check
        %p904 = pneg %p903
      $region50: #{_embedding_net_call.1} parent=5 // pred_check_branch
        %906 = sbr.rel (%p904) target = $region52
      $region51: #{_embedding_net_call.1} parent=5 // pred_region
        %s907 = ssub.s32 %s16, 2
        // Predicated region
        $region53: #{_embedding_net_call.1} parent=51 // pred_check
          %p908 = pneg %p113
        $region54: #{_embedding_net_call.1} parent=51 // pred_check_branch
          %910 = sbr.rel (%p908) target = $region56
        $region55: #{_embedding_net_call.1} parent=51 // pred_region
          %s911 = sand.u32 %s98, 1
          %s912 = scalar_lea.sflag [#allocation4], %s911
          %s913 = sand.u32 %s98, 1
          %s914 = smul.addr %s913, 8
          %s915 = scalar_lea.vmem [#allocation8], %s914
          %917 = dma.done %s912, 128
        $region56: #{_embedding_net_call.1} parent=51 // pred_fallthru
          _
      $region52: #{_embedding_net_call.1} parent=5 // pred_fallthru
        _
    $region6: #{_embedding_net_call.1} parent=1 // loop_footer
      %s20 = sadd.s32 1, %s16
    $region7: #{_embedding_net_call.1} parent=1 // loop_footer_branch
      %15 = sbr.rel target = $region3
    $region8: #{_embedding_net_call.1} parent=1 // loop_exit
      _
    %918 = vsyncpa [#allocation3], 1
    %s919 = scalar_lea.sflag [#allocation3], 1
    %920 = vsyncpa %s919, 1
    %921 = vsyncpa [#allocation6], 1
    %922 = vsyncpa [#allocation4], 1
    %s923 = scalar_lea.sflag [#allocation4], 1
    %924 = vsyncpa %s923, 1

</llo_original>
